<compile_context>
chip_gen: v5e
topology: v5e:2x2
jax: 0.10.0
libtpu: 0.0.40
codegen_flags: <defaults>
</compile_context>

<pallas_src>
import jax
import jax.numpy as jnp
from jax.experimental import pallas as pl
from jax.experimental.pallas import tpu as pltpu


def mlp_value_kernel(xt_ref, w1_ref, b1_ref, w2_ref, b2_ref, w3_ref, b3_ref, o_ref):
    """Fused 3-layer MLP value head, transposed dataflow (batch on lanes).

    xt_ref : (D_in, TB)  input tile, batch along the lane axis
    w1_ref : (H,  D_in)  PyTorch-native Linear weight layout (out, in)
    b1_ref : (H,  1)
    w2_ref : (H2, H)
    b2_ref : (H2, 1)
    w3_ref : (H2, 1)     final Linear(h2, 1) weight as a column
    b3_ref : (1,)        scalar bias in SMEM
    o_ref  : (1,  TB)    lane-dense value row
    """
    xt = xt_ref[...]
    # Layer 1: (H, D_in) @ (D_in, TB) -> (H, TB); MXU N dimension = TB (lane-full).
    h1 = jnp.dot(w1_ref[...], xt, preferred_element_type=jnp.float32) + b1_ref[...]
    h1 = jnp.maximum(h1, 0.0)        # ReLU (Dropout(0.1) = identity at inference)
    # Layer 2: (H2, H) @ (H, TB) -> (H2, TB)
    h2 = jnp.dot(w2_ref[...], h1, preferred_element_type=jnp.float32) + b2_ref[...]
    h2 = jnp.maximum(h2, 0.0)        # ReLU (Dropout = identity)
    # Layer 3 (H2 -> 1): w3-weighted sublane reduce -> (1, TB), natively lane-dense.
    vals = jnp.sum(h2 * w3_ref[...], axis=0, keepdims=True) + b3_ref[0]
    o_ref[...] = vals.astype(o_ref.dtype)


def transformer_value_forward(x, params, *, tb=None):
    """Value-head forward.  x: (B, d_in) -> (B, 1)."""
    B, d_in = x.shape
    h = params["w1"].shape[0]
    h2 = params["w2"].shape[0]

    if tb is None:
        # Single grid step for small/medium batches; 1024-row tiles at scale.
        tb = pl.cdiv(B, 128) * 128 if B <= 1024 else 1024
    grid_b = pl.cdiv(B, tb)

    # Batch onto the lane axis (layout plumbing in the wrapper, not compute).
    xt = x.T                                        # (d_in, B)

    flops = 2 * B * (d_in * h + h * h2 + h2)
    bytes_accessed = 4 * (B * d_in + B + d_in * h + h + h * h2 + 2 * h2 + 1)

    out = pl.pallas_call(
        mlp_value_kernel,
        out_shape=jax.ShapeDtypeStruct((1, B), jnp.float32),
        grid=(grid_b,),
        in_specs=[
            pl.BlockSpec((d_in, tb), lambda i: (0, i)),         # x^T: tiled over batch lanes
            pl.BlockSpec((h, d_in), lambda i: (0, 0)),          # W1 (resident)
            pl.BlockSpec((h, 1), lambda i: (0, 0)),             # b1 (column)
            pl.BlockSpec((h2, h), lambda i: (0, 0)),            # W2 (resident)
            pl.BlockSpec((h2, 1), lambda i: (0, 0)),            # b2 (column)
            pl.BlockSpec((h2, 1), lambda i: (0, 0)),            # w3 (column)
            pl.BlockSpec(memory_space=pltpu.MemorySpace.SMEM),  # b3 scalar in SMEM
        ],
        out_specs=pl.BlockSpec((1, tb), lambda i: (0, i)),      # lane-dense output tile
        compiler_params=pltpu.CompilerParams(
            dimension_semantics=("parallel",),                  # batch tiles independent
            vmem_limit_bytes=32 * 1024 * 1024,
        ),
        cost_estimate=pl.CostEstimate(
            flops=flops, transcendentals=0, bytes_accessed=bytes_accessed),
    )(xt, params["w1"], params["b1"], params["w2"], params["b2"],
      params["w3_col"], params["b3"])

    # (1, B) row -> (B, 1) column (pure metadata reshape).
    return out.reshape(B, 1)


def xavier_uniform(key, shape, fan_in, fan_out):
    """nn.init.xavier_uniform_ equivalent (symmetric bound, layout-agnostic)."""
    bound = (6.0 / (fan_in + fan_out)) ** 0.5
    return jax.random.uniform(key, shape, jnp.float32, -bound, bound)


def init_params(key, input_dim, hidden_dim):
    h2 = hidden_dim // 2
    k1, k2, k3 = jax.random.split(key, 3)
    return {
        # PyTorch-native Linear layout: weight (out_features, in_features).
        "w1": xavier_uniform(k1, (hidden_dim, input_dim), input_dim, hidden_dim),
        "b1": jnp.zeros((hidden_dim, 1), jnp.float32),
        "w2": xavier_uniform(k2, (h2, hidden_dim), hidden_dim, h2),
        "b2": jnp.zeros((h2, 1), jnp.float32),
        # Final Linear(h2, 1) weight kept as a column for the sublane reduce.
        "w3_col": xavier_uniform(k3, (h2, 1), h2, 1),
        "b3": jnp.zeros((1,), jnp.float32),
    }


def reference_forward(x, p):
    """Pure-JAX reference for correctness check."""
    h1 = jnp.maximum(x @ p["w1"].T + p["b1"].T, 0.0)
    h2 = jnp.maximum(h1 @ p["w2"].T + p["b2"].T, 0.0)
    return h2 @ p["w3_col"] + p["b3"]


if __name__ == "__main__":
    # Small config consistent with the module: config = {'input_dim': 32, 'hidden_dim': 32}.
    # batch=200 is not a multiple of 128 -> exercises the clipped boundary block.
    batch, input_dim, hidden_dim = 200, 32, 32

    key = jax.random.PRNGKey(0)
    kx, kx2, kp = jax.random.split(key, 3)
    x = jax.random.normal(kx, (batch, input_dim), jnp.float32)
    params = init_params(kp, input_dim, hidden_dim)

    out = jax.block_until_ready(transformer_value_forward(x, params))
    ref = reference_forward(x, params)
    assert out.shape == (batch, 1)
    assert jnp.allclose(out, ref, atol=1e-5, rtol=1e-5), "mismatch vs reference (single-tile)"

    # Multi-step grid path (forced small tile): 3 tiles of 128 over B=300, last
    # tile clipped — validates the scalable / boundary-handled path.
    x2 = jax.random.normal(kx2, (300, input_dim), jnp.float32)
    out2 = jax.block_until_ready(transformer_value_forward(x2, params, tb=128))
    assert jnp.allclose(out2, reference_forward(x2, params), atol=1e-5, rtol=1e-5), \
        "mismatch vs reference (multi-tile)"

    # TODO(synk): the HF-backbone branch (AutoTokenizer/AutoModel encode path) is not
    # translatable to Pallas; the module's actual runtime path in this environment
    # (LinearValueFunction fallback) is what this kernel implements.
    print("KERNEL_OK")
</pallas_src>

<mosaic_0001>
module attributes {stable_mosaic.version = 11 : i64} {
  func.func @mlp_value_kernel(%arg0: i32, %arg1: memref<32x256xf32, #tpu.memory_space<vmem>>, %arg2: memref<32x32xf32, #tpu.memory_space<vmem>>, %arg3: memref<32x1xf32, #tpu.memory_space<vmem>>, %arg4: memref<16x32xf32, #tpu.memory_space<vmem>>, %arg5: memref<16x1xf32, #tpu.memory_space<vmem>>, %arg6: memref<16x1xf32, #tpu.memory_space<vmem>>, %arg7: memref<1xf32, #tpu.memory_space<smem>>, %arg8: memref<1x256xf32, #tpu.memory_space<vmem>>) attributes {dimension_semantics = [#tpu.dimension_semantics<parallel>], iteration_bounds = array<i64: 1>, scalar_prefetch = 0 : i64, scratch_operands = 0 : i64, tpu.core_type = #tpu.core_type<tc>, window_params = [{transform_indices = @transform_0, window_bounds = array<i64: 32, 256>}, {pipeline_mode = #tpu.pipeline_mode<synchronous>, transform_indices = @transform_1, window_bounds = array<i64: 32, 32>}, {pipeline_mode = #tpu.pipeline_mode<synchronous>, transform_indices = @transform_2, window_bounds = array<i64: 32, 1>}, {pipeline_mode = #tpu.pipeline_mode<synchronous>, transform_indices = @transform_3, window_bounds = array<i64: 16, 32>}, {pipeline_mode = #tpu.pipeline_mode<synchronous>, transform_indices = @transform_4, window_bounds = array<i64: 16, 1>}, {pipeline_mode = #tpu.pipeline_mode<synchronous>, transform_indices = @transform_5, window_bounds = array<i64: 16, 1>}, {transform_indices = @transform_6, window_bounds = array<i64: 1>}, {transform_indices = @transform_7, window_bounds = array<i64: 1, 256>}]} {
    %c0 = arith.constant 0 : index
    %c0_0 = arith.constant 0 : index
    %0 = vector.load %arg1[%c0, %c0_0] : memref<32x256xf32, #tpu.memory_space<vmem>>, vector<32x256xf32>
    %c0_1 = arith.constant 0 : index
    %c0_2 = arith.constant 0 : index
    %1 = vector.load %arg2[%c0_1, %c0_2] : memref<32x32xf32, #tpu.memory_space<vmem>>, vector<32x32xf32>
    %cst = arith.constant dense<0.000000e+00> : vector<32x256xf32>
    %2 = tpu.matmul %1, %0, %cst {dimension_numbers = #tpu.dot_dimension_numbers<[1], [0], [0], [1], [0, 0, 1, 1], [], []>} : vector<32x32xf32>, vector<32x256xf32>, vector<32x256xf32> -> vector<32x256xf32>
    %c0_3 = arith.constant 0 : index
    %c0_4 = arith.constant 0 : index
    %3 = vector.load %arg3[%c0_3, %c0_4] : memref<32x1xf32, #tpu.memory_space<vmem>>, vector<32x1xf32>
    %4 = vector.broadcast %3 : vector<32x1xf32> to vector<32x256xf32>
    %5 = arith.addf %2, %4 : vector<32x256xf32>
    %cst_5 = arith.constant 0.000000e+00 : f32
    %6 = vector.broadcast %cst_5 : f32 to vector<32x256xf32>
    %7 = arith.maximumf %5, %6 : vector<32x256xf32>
    %c0_6 = arith.constant 0 : index
    %c0_7 = arith.constant 0 : index
    %8 = vector.load %arg4[%c0_6, %c0_7] : memref<16x32xf32, #tpu.memory_space<vmem>>, vector<16x32xf32>
    %cst_8 = arith.constant dense<0.000000e+00> : vector<16x256xf32>
    %9 = tpu.matmul %8, %7, %cst_8 {dimension_numbers = #tpu.dot_dimension_numbers<[1], [0], [0], [1], [0, 0, 1, 1], [], []>} : vector<16x32xf32>, vector<32x256xf32>, vector<16x256xf32> -> vector<16x256xf32>
    %c0_9 = arith.constant 0 : index
    %c0_10 = arith.constant 0 : index
    %10 = vector.load %arg5[%c0_9, %c0_10] : memref<16x1xf32, #tpu.memory_space<vmem>>, vector<16x1xf32>
    %11 = vector.broadcast %10 : vector<16x1xf32> to vector<16x256xf32>
    %12 = arith.addf %9, %11 : vector<16x256xf32>
    %cst_11 = arith.constant 0.000000e+00 : f32
    %13 = vector.broadcast %cst_11 : f32 to vector<16x256xf32>
    %14 = arith.maximumf %12, %13 : vector<16x256xf32>
    %c0_12 = arith.constant 0 : index
    %c0_13 = arith.constant 0 : index
    %15 = vector.load %arg6[%c0_12, %c0_13] : memref<16x1xf32, #tpu.memory_space<vmem>>, vector<16x1xf32>
    %16 = vector.broadcast %15 : vector<16x1xf32> to vector<16x256xf32>
    %17 = arith.mulf %14, %16 : vector<16x256xf32>
    %cst_14 = arith.constant dense<0.000000e+00> : vector<256xf32>
    %18 = vector.multi_reduction <add>, %17, %cst_14 [0] : vector<16x256xf32> to vector<256xf32>
    %19 = vector.shape_cast %18 : vector<256xf32> to vector<1x256xf32>
    %c0_15 = arith.constant 0 : index
    %20 = memref.load %arg7[%c0_15] : memref<1xf32, #tpu.memory_space<smem>>
    %21 = vector.broadcast %20 : f32 to vector<1x256xf32>
    %22 = arith.addf %19, %21 : vector<1x256xf32>
    %c0_16 = arith.constant 0 : index
    %c0_17 = arith.constant 0 : index
    %23 = vector.load %arg8[%c0_16, %c0_17] : memref<1x256xf32, #tpu.memory_space<vmem>>, vector<1x256xf32>
    tpu.vector_store %arg8[%c0_16, %c0_17], %22 {strides = array<i32>} : memref<1x256xf32, #tpu.memory_space<vmem>>, vector<1x256xf32>,
    return
  }
  func.func @transform_0(%arg0: i32) -> (i32, i32) {
    %c0_i32 = arith.constant 0 : i32
    %c0_i32_0 = arith.constant 0 : i32
    return %c0_i32, %arg0 : i32, i32
  }
  func.func @transform_1(%arg0: i32) -> (i32, i32) {
    %c0_i32 = arith.constant 0 : i32
    %c0_i32_0 = arith.constant 0 : i32
    %c0_i32_1 = arith.constant 0 : i32
    return %c0_i32, %c0_i32_0 : i32, i32
  }
  func.func @transform_2(%arg0: i32) -> (i32, i32) {
    %c0_i32 = arith.constant 0 : i32
    %c0_i32_0 = arith.constant 0 : i32
    %c0_i32_1 = arith.constant 0 : i32
    return %c0_i32, %c0_i32_0 : i32, i32
  }
  func.func @transform_3(%arg0: i32) -> (i32, i32) {
    %c0_i32 = arith.constant 0 : i32
    %c0_i32_0 = arith.constant 0 : i32
    %c0_i32_1 = arith.constant 0 : i32
    return %c0_i32, %c0_i32_0 : i32, i32
  }
  func.func @transform_4(%arg0: i32) -> (i32, i32) {
    %c0_i32 = arith.constant 0 : i32
    %c0_i32_0 = arith.constant 0 : i32
    %c0_i32_1 = arith.constant 0 : i32
    return %c0_i32, %c0_i32_0 : i32, i32
  }
  func.func @transform_5(%arg0: i32) -> (i32, i32) {
    %c0_i32 = arith.constant 0 : i32
    %c0_i32_0 = arith.constant 0 : i32
    %c0_i32_1 = arith.constant 0 : i32
    return %c0_i32, %c0_i32_0 : i32, i32
  }
  func.func @transform_6(%arg0: i32) -> i32 {
    %c0_i32 = arith.constant 0 : i32
    %c0_i32_0 = arith.constant 0 : i32
    return %c0_i32 : i32
  }
  func.func @transform_7(%arg0: i32) -> (i32, i32) {
    %c0_i32 = arith.constant 0 : i32
    %c0_i32_0 = arith.constant 0 : i32
    return %c0_i32, %arg0 : i32, i32
  }
}

</mosaic_0001>

<llo_original>
// kernel: tpu_custom_call.1
$region0: #{tpu_custom_call.1}
  #allocation0 [shape = 'u32[]', space=smem, size = 0x4, offset = 0x4, fixed_abs, tag = 'smem constant byte address 0x4 - core index']
  #allocation1 [shape = 'u32[72,128]{1,0:T(1,128)}', space=vmem, size = 0x9000, scoped, tag = 'internal scratch']
  #allocation2 [shape = 'f32[1]{0:T(128)S(6)}', space=smem, size = 0x200, scoped, tag = 'scoped memory for tpu_custom_call.1']
  %s0 = inlined_call_operand.vmem [shape: f32[32,200], index: 0, kind: input, shape index: {}]
  %s1 = inlined_call_operand.hbm [shape: f32[32,32], index: 1, kind: input, shape index: {}]
  %s2 = inlined_call_operand.vmem [shape: f32[32,1], index: 2, kind: input, shape index: {}]
  %s3 = inlined_call_operand.hbm [shape: f32[16,32], index: 3, kind: input, shape index: {}]
  %s4 = inlined_call_operand.vmem [shape: f32[16,1], index: 4, kind: input, shape index: {}]
  %s5 = inlined_call_operand.vmem [shape: f32[16,1], index: 5, kind: input, shape index: {}]
  %s6 = inlined_call_operand.<no memory space> [shape: f32[1], index: 6, kind: input, shape index: {}]
  %s7 = inlined_call_operand.hbm [shape: f32[1,200], index: 7, kind: output, shape index: {}]
  %s8 = sld [smem:[#allocation0]]
  $region46: #{tpu_custom_call.1} parent=0
    _
  %s10 = ssub.s32 1, %s8
  %s11 = scalar_select 0, %s10, %s8
  %12 = sst [smem:[#allocation2]] %s6
  $region1: #{tpu_custom_call.1} parent=0
    #allocation3 [shape = 'u8[16384]{0}', space=vmem, size = 0x4000, scoped, tag = 'input window, operand 1, single buffered']
    #allocation4 [shape = 's32[1]{0}', space=sflag, size = 0x4, scoped, tag = 'scoped memory for tpu_custom_call.1']
    #allocation5 [shape = 's32[1]{0}', space=sflag, size = 0x4, scoped, tag = 'scoped memory for tpu_custom_call.1']
    #allocation6 [shape = 'u8[8192]{0}', space=vmem, size = 0x2000, scoped, tag = 'input window, operand 3, single buffered']
    #allocation7 [shape = 's32[1]{0}', space=sflag, size = 0x4, scoped, tag = 'scoped memory for tpu_custom_call.1']
    #allocation8 [shape = 'u8[1024]{0}', space=vmem, size = 0x400, scoped, tag = 'output window, operand 0, single buffered']
    %13 = vsyncpa [#allocation4], 0
    %14 = vsyncpa [#allocation7], 0
    %15 = vsyncpa [#allocation5], 0
    // Predicated region
    $region2: #{tpu_custom_call.1} parent=1 // pred_check
      _
    $region3: #{tpu_custom_call.1} parent=1 // pred_check_branch
      %17 = sbr.rel (0) target = $region5
    $region4: #{tpu_custom_call.1} parent=1 // pred_region
      _
    $region5: #{tpu_custom_call.1} parent=1 // pred_fallthru
      _
    // Predicated region
    $region6: #{tpu_custom_call.1} parent=1 // pred_check
      _
    $region7: #{tpu_custom_call.1} parent=1 // pred_check_branch
      %19 = sbr.rel (0) target = $region9
    $region8: #{tpu_custom_call.1} parent=1 // pred_region
      %21 = vsyncadd [#allocation4], 0
      %s22 = sshll.u32 %s1, 4
      %s23 = int_to_ptr.hbm [resolvable:$true] %s22
      %s24 = sshll.u32 [#allocation3], 4
      %s25 = int_to_ptr.vmem [resolvable:$true] %s24
      %30 = dma.hbm_to_vmem [thread:$0]  %s23, 512, %s25, [#allocation4], 128, 128, 8
    $region9: #{tpu_custom_call.1} parent=1 // pred_fallthru
      _
    // Predicated region
    $region10: #{tpu_custom_call.1} parent=1 // pred_check
      _
    $region11: #{tpu_custom_call.1} parent=1 // pred_check_branch
      %32 = sbr.rel (0) target = $region13
    $region12: #{tpu_custom_call.1} parent=1 // pred_region
      _
    $region13: #{tpu_custom_call.1} parent=1 // pred_fallthru
      _
    // Predicated region
    $region14: #{tpu_custom_call.1} parent=1 // pred_check
      _
    $region15: #{tpu_custom_call.1} parent=1 // pred_check_branch
      %34 = sbr.rel (0) target = $region17
    $region16: #{tpu_custom_call.1} parent=1 // pred_region
      %36 = vsyncadd [#allocation7], 0
      %s37 = sshll.u32 %s3, 4
      %s38 = int_to_ptr.hbm [resolvable:$true] %s37
      %s39 = sshll.u32 [#allocation6], 4
      %s40 = int_to_ptr.vmem [resolvable:$true] %s39
      %45 = dma.hbm_to_vmem [thread:$0]  %s38, 256, %s40, [#allocation7], 128, 128, 8
    $region17: #{tpu_custom_call.1} parent=1 // pred_fallthru
      _
    // Predicated region
    $region18: #{tpu_custom_call.1} parent=1 // pred_check
      _
    $region19: #{tpu_custom_call.1} parent=1 // pred_check_branch
      %47 = sbr.rel (0) target = $region21
    $region20: #{tpu_custom_call.1} parent=1 // pred_region
      _
    $region21: #{tpu_custom_call.1} parent=1 // pred_fallthru
      _
    // Predicated region
    $region22: #{tpu_custom_call.1} parent=1 // pred_check
      _
    $region23: #{tpu_custom_call.1} parent=1 // pred_check_branch
      %49 = sbr.rel (0) target = $region25
    $region24: #{tpu_custom_call.1} parent=1 // pred_region
      _
    $region25: #{tpu_custom_call.1} parent=1 // pred_fallthru
      _
    // Predicated region
    $region26: #{tpu_custom_call.1} parent=1 // pred_check
      _
    $region27: #{tpu_custom_call.1} parent=1 // pred_check_branch
      %51 = sbr.rel (0) target = $region29
    $region28: #{tpu_custom_call.1} parent=1 // pred_region
      _
    $region29: #{tpu_custom_call.1} parent=1 // pred_fallthru
      _
    // Predicated region
    $region30: #{tpu_custom_call.1} parent=1 // pred_check
      _
    $region31: #{tpu_custom_call.1} parent=1 // pred_check_branch
      %53 = sbr.rel (0) target = $region33
    $region32: #{tpu_custom_call.1} parent=1 // pred_region
      %55 = dma.done [#allocation4], 512
    $region33: #{tpu_custom_call.1} parent=1 // pred_fallthru
      _
    // Predicated region
    $region34: #{tpu_custom_call.1} parent=1 // pred_check
      _
    $region35: #{tpu_custom_call.1} parent=1 // pred_check_branch
      %57 = sbr.rel (0) target = $region37
    $region36: #{tpu_custom_call.1} parent=1 // pred_region
      %59 = dma.done [#allocation7], 256
    $region37: #{tpu_custom_call.1} parent=1 // pred_fallthru
      _
    %v60 = vld [vmem:[%s0] sm:$0xff]
    %v61 = vld [vmem:[%s0 + $0x8] sm:$0xff]
    %v62 = vld [vmem:[%s0 + $0x10] sm:$0xff]
    %v63 = vld [vmem:[%s0 + $0x18] sm:$0xff]
    %v64 = vld [vmem:[%s0 + $0x20] sm:$0xff]
    %v65 = vld [vmem:[%s0 + $0x28] sm:$0xff]
    %v66 = vld [vmem:[%s0 + $0x30] sm:$0xff]
    %v67 = vld [vmem:[%s0 + $0x38] sm:$0xff]
    %v68 = vld [vmem:[#allocation3] sm:$0xff]
    %v69 = vld [vmem:[#allocation3 + $0x8] sm:$0xff]
    %v70 = vld [vmem:[#allocation3 + $0x10] sm:$0xff]
    %v71 = vld [vmem:[#allocation3 + $0x18] sm:$0xff]
    %v72 = vld [vmem:[%s2] sm:$0xff]
    %v73 = vld [vmem:[%s2 + $0x8] sm:$0xff]
    %v74 = vld [vmem:[%s2 + $0x10] sm:$0xff]
    %v75 = vld [vmem:[%s2 + $0x18] sm:$0xff]
    %77 = vset.pattern.permute.xlu0 0
    %78 = vperm.xlu0 %77, %v72
    %v79 = vpop.permute.xlu0 %78
    %82 = vset.pattern.permute.xlu0 0
    %83 = vperm.xlu0 %82, %v73
    %v84 = vpop.permute.xlu0 %83
    %87 = vset.pattern.permute.xlu0 0
    %88 = vperm.xlu0 %87, %v74
    %v89 = vpop.permute.xlu0 %88
    %92 = vset.pattern.permute.xlu0 0
    %93 = vperm.xlu0 %92, %v75
    %v94 = vpop.permute.xlu0 %93
    %vm96 = vcmask 261120
    %v98 = vsel %vm96, %v68, 0
    %v101 = vsel %vm96, %v69, 0
    %v104 = vsel %vm96, %v70, 0
    %v107 = vsel %vm96, %v71, 0
    %109 = vmatpush.msra.mxu0 0.0
    %110 = vmatpush.msra.mxu0 0.0
    %111 = vmatpush.msra.mxu0 0.0
    %112 = vmatpush.msra.mxu0 0.0
    %113 = vmatpush.msra.mxu0 0.0
    %114 = vmatpush.msra.mxu0 0.0
    %115 = vmatpush.msra.mxu0 0.0
    %116 = vmatpush.msra.mxu0 0.0
    %117 = vmatpush.msra.mxu0 0.0
    %118 = vmatpush.msra.mxu0 0.0
    %119 = vmatpush.msra.mxu0 0.0
    %120 = vmatpush.msra.mxu0 0.0
    %121 = vmatpush.msra.mxu0 %v66
    %122 = vmatpush.msra.mxu0 %v64
    %123 = vmatpush.msra.mxu0 %v62
    %124 = vmatpush.msra.mxu0 %v60
    %125 = vmatmul.f32.gmra.mxu0 %v98
    %v126 = vpop.f32.mrf.mxu0
    %v127 = vadd.f32 %v79, %v126
    %128 = vmatmul.f32.gmra.mxu0 %v101
    %v129 = vpop.f32.mrf.mxu0
    %v130 = vadd.f32 %v84, %v129
    %131 = vmatmul.f32.gmra.mxu0 %v104
    %v132 = vpop.f32.mrf.mxu0
    %v133 = vadd.f32 %v89, %v132
    %134 = vmatmul.f32.gmra.mxu0 %v107
    %v135 = vpop.f32.mrf.mxu0
    %v136 = vadd.f32 %v94, %v135
    %137 = vdwg.mxu0
    %138 = vmatpush.msra.mxu0 0.0
    %139 = vmatpush.msra.mxu0 0.0
    %140 = vmatpush.msra.mxu0 0.0
    %141 = vmatpush.msra.mxu0 0.0
    %142 = vmatpush.msra.mxu0 0.0
    %143 = vmatpush.msra.mxu0 0.0
    %144 = vmatpush.msra.mxu0 0.0
    %145 = vmatpush.msra.mxu0 0.0
    %146 = vmatpush.msra.mxu0 0.0
    %147 = vmatpush.msra.mxu0 0.0
    %148 = vmatpush.msra.mxu0 0.0
    %149 = vmatpush.msra.mxu0 0.0
    %150 = vmatpush.msra.mxu0 %v67
    %151 = vmatpush.msra.mxu0 %v65
    %152 = vmatpush.msra.mxu0 %v63
    %153 = vmatpush.msra.mxu0 %v61
    %154 = vmatmul.f32.gmra.mxu0 %v98
    %v155 = vpop.f32.mrf.mxu0
    %v156 = vadd.f32 %v79, %v155
    %157 = vmatmul.f32.gmra.mxu0 %v101
    %v158 = vpop.f32.mrf.mxu0
    %v159 = vadd.f32 %v84, %v158
    %160 = vmatmul.f32.gmra.mxu0 %v104
    %v161 = vpop.f32.mrf.mxu0
    %v162 = vadd.f32 %v89, %v161
    %163 = vmatmul.f32.gmra.mxu0 %v107
    %v164 = vpop.f32.mrf.mxu0
    %v165 = vadd.f32 %v94, %v164
    %166 = vdwg.mxu0
    %v167 = vmax.f32 %v127, 0.0
    %v168 = vmax.f32 %v156, 0.0
    %v169 = vmax.f32 %v130, 0.0
    %v170 = vmax.f32 %v159, 0.0
    %v171 = vmax.f32 %v133, 0.0
    %v172 = vmax.f32 %v162, 0.0
    %v173 = vmax.f32 %v136, 0.0
    %v174 = vmax.f32 %v165, 0.0
    %v175 = vld [vmem:[#allocation6] sm:$0xff]
    %v176 = vld [vmem:[#allocation6 + $0x8] sm:$0xff]
    %v177 = vld [vmem:[%s4] sm:$0xff]
    %v178 = vld [vmem:[%s4 + $0x8] sm:$0xff]
    %180 = vset.pattern.permute.xlu0 0
    %181 = vperm.xlu0 %180, %v177
    %v182 = vpop.permute.xlu0 %181
    %185 = vset.pattern.permute.xlu0 0
    %186 = vperm.xlu0 %185, %v178
    %v187 = vpop.permute.xlu0 %186
    %v190 = vsel %vm96, %v175, 0
    %v193 = vsel %vm96, %v176, 0
    %195 = vmatpush.msra.mxu0 0.0
    %196 = vmatpush.msra.mxu0 0.0
    %197 = vmatpush.msra.mxu0 0.0
    %198 = vmatpush.msra.mxu0 0.0
    %199 = vmatpush.msra.mxu0 0.0
    %200 = vmatpush.msra.mxu0 0.0
    %201 = vmatpush.msra.mxu0 0.0
    %202 = vmatpush.msra.mxu0 0.0
    %203 = vmatpush.msra.mxu0 0.0
    %204 = vmatpush.msra.mxu0 0.0
    %205 = vmatpush.msra.mxu0 0.0
    %206 = vmatpush.msra.mxu0 0.0
    %207 = vmatpush.msra.mxu0 %v173
    %208 = vmatpush.msra.mxu0 %v171
    %209 = vmatpush.msra.mxu0 %v169
    %210 = vmatpush.msra.mxu0 %v167
    %211 = vmatmul.f32.gmra.mxu0 %v190
    %v212 = vpop.f32.mrf.mxu0
    %v213 = vadd.f32 %v182, %v212
    %214 = vmatmul.f32.gmra.mxu0 %v193
    %v215 = vpop.f32.mrf.mxu0
    %v216 = vadd.f32 %v187, %v215
    %217 = vdwg.mxu0
    %218 = vmatpush.msra.mxu0 0.0
    %219 = vmatpush.msra.mxu0 0.0
    %220 = vmatpush.msra.mxu0 0.0
    %221 = vmatpush.msra.mxu0 0.0
    %222 = vmatpush.msra.mxu0 0.0
    %223 = vmatpush.msra.mxu0 0.0
    %224 = vmatpush.msra.mxu0 0.0
    %225 = vmatpush.msra.mxu0 0.0
    %226 = vmatpush.msra.mxu0 0.0
    %227 = vmatpush.msra.mxu0 0.0
    %228 = vmatpush.msra.mxu0 0.0
    %229 = vmatpush.msra.mxu0 0.0
    %230 = vmatpush.msra.mxu0 %v174
    %231 = vmatpush.msra.mxu0 %v172
    %232 = vmatpush.msra.mxu0 %v170
    %233 = vmatpush.msra.mxu0 %v168
    %234 = vmatmul.f32.gmra.mxu0 %v190
    %v235 = vpop.f32.mrf.mxu0
    %v236 = vadd.f32 %v182, %v235
    %237 = vmatmul.f32.gmra.mxu0 %v193
    %v238 = vpop.f32.mrf.mxu0
    %v239 = vadd.f32 %v187, %v238
    %240 = vdwg.mxu0
    %v241 = vmax.f32 %v213, 0.0
    %v242 = vmax.f32 %v236, 0.0
    %v243 = vmax.f32 %v216, 0.0
    %v244 = vmax.f32 %v239, 0.0
    %v245 = vld [vmem:[%s5] sm:$0xff]
    %v246 = vld [vmem:[%s5 + $0x8] sm:$0xff]
    %248 = vset.pattern.permute.xlu0 0
    %249 = vperm.xlu0 %248, %v245
    %v250 = vpop.permute.xlu0 %249
    %253 = vset.pattern.permute.xlu0 0
    %254 = vperm.xlu0 %253, %v246
    %v255 = vpop.permute.xlu0 %254
    %v257 = vmul.f32 %v241, %v250
    %v258 = vmul.f32 %v242, %v250
    %v259 = vmul.f32 %v243, %v255
    %v260 = vmul.f32 %v244, %v255
    %v261 = vadd.f32 %v257, %v259
    %v262 = vrot.slane %v261, 4
    %v263 = vadd.f32 %v261, %v262
    %v264 = vrot.slane %v263, 2
    %v265 = vadd.f32 %v263, %v264
    %v266 = vrot.slane %v265, 1
    %v267 = vadd.f32 %v265, %v266
    %v268 = vadd.f32 %v258, %v260
    %v269 = vrot.slane %v268, 4
    %v270 = vadd.f32 %v268, %v269
    %v271 = vrot.slane %v270, 2
    %v272 = vadd.f32 %v270, %v271
    %v273 = vrot.slane %v272, 1
    %v274 = vadd.f32 %v272, %v273
    %s275 = sld [smem:[#allocation2]]
    %v276 = vstv %s275
    %v277 = vadd.f32 %v267, %v276
    %v278 = vadd.f32 %v274, %v276
    %v281 = vrot.slane %v278, 7
    %vm282 = vcmask 1040384
    %v283 = vsel %vm282, %v277, %v281
    %v285 = vlaneseq
    %vm286 = vcmp.ge.s32.totalorder %v285, 0
    %vm287 = vcmp.lt.s32.totalorder %v285, 256
    %vm288 = vmand %vm286, %vm287
    %289 = vst.msk [vmem:[#allocation8] sm:$0x3] %vm288, %v283
    // Predicated region
    $region38: #{tpu_custom_call.1} parent=1 // pred_check
      _
    $region39: #{tpu_custom_call.1} parent=1 // pred_check_branch
      %291 = sbr.rel (0) target = $region41
    $region40: #{tpu_custom_call.1} parent=1 // pred_region
      %293 = vsyncadd [#allocation5], 0
      %s295 = sshll.u32 [#allocation8], 4
      %s296 = int_to_ptr.vmem [resolvable:$true] %s295
      %s297 = sshll.u32 %s7, 4
      %s298 = int_to_ptr.hbm [resolvable:$true] %s297
      %300 = dma.vmem_to_hbm [thread:$0]  %s296, 32, %s298, [#allocation5]
    $region41: #{tpu_custom_call.1} parent=1 // pred_fallthru
      _
    // Predicated region
    $region42: #{tpu_custom_call.1} parent=1 // pred_check
      _
    $region43: #{tpu_custom_call.1} parent=1 // pred_check_branch
      %302 = sbr.rel (0) target = $region45
    $region44: #{tpu_custom_call.1} parent=1 // pred_region
      %304 = dma.done [#allocation5], 32
    $region45: #{tpu_custom_call.1} parent=1 // pred_fallthru
      _
    %305 = vsyncpa [#allocation4], 1
    %306 = vsyncpa [#allocation7], 1
    %307 = vsyncpa [#allocation5], 1

</llo_original>
